<compile_context>
chip_gen: v6e
topology: v6e:2x2x1
jax: 0.10.0
libtpu: 0.0.40
codegen_flags: <defaults>
</compile_context>

<pallas_src>
import jax
import jax.numpy as jnp
from jax import lax
from jax.experimental import pallas as pl
from jax.experimental.pallas import tpu as pltpu


def _linkpred_kernel(zs_ref, zd_ref, w1s_t_ref, w1d_t_ref, b1_ref, w2t_ref, b2_ref, o_ref):
    # In-kernel bf16 cast of the streamed f32 activation tiles (cheap VPU op; avoids a
    # standalone HBM cast pass in the wrapper and keeps the MXU matmuls single-pass).
    zs = zs_ref[...].astype(jnp.bfloat16)            # (tile_m, C)
    zd = zd_ref[...].astype(jnp.bfloat16)            # (tile_m, C)

    # Layer 1 in transposed orientation: contract the channel axis of both operands,
    #   hT = W1_src^T . zs^T + W1_dst^T . zd^T  -> (H, tile_m), f32 accumulation on MXU.
    dims = (((1,), (1,)), ((), ()))
    hT = (
        lax.dot_general(w1s_t_ref[...], zs, dims, preferred_element_type=jnp.float32)
        + lax.dot_general(w1d_t_ref[...], zd, dims, preferred_element_type=jnp.float32)
        + b1_ref[...]                                # (H, 1) broadcast along lanes
    )
    hT = jnp.maximum(hT, 0.0)                        # ReLU in f32 (v5e: no bf16 VPU path)

    # Layer 2: plain (out_ch, H) @ (H, tile_m) MXU matmul -> lane-dense (out_ch, tile_m).
    y = jnp.dot(w2t_ref[...], hT.astype(jnp.bfloat16),
                preferred_element_type=jnp.float32) + b2_ref[...]
    o_ref[...] = y.astype(o_ref.dtype)


def link_predictor_forward(z_src, z_dst, params, *, tile_m=2048):
    """Pallas forward pass; returns a flat vector matching torch `x.view(-1)`."""
    w1, b1, w2, b2 = params["w1"], params["b1"], params["w2"], params["b2"]
    n, c = z_src.shape
    two_c, hidden = w1.shape
    assert two_c == 2 * c
    out_ch = w2.shape[1]

    # Row tile: multiple of 128 (unmasked lane-dense output stores on full blocks), large
    # enough to amortize the ~0.35us per-grid-step overhead, but capped so mid-size
    # problems keep >= 2 grid steps (v7x: two TensorCores share the "parallel" axis).
    two_step_cap = pl.cdiv(n, 2 * 128) * 128
    tile_m = max(128, min(int(tile_m), two_step_cap, 8192))
    grid_m = pl.cdiv(n, tile_m)

    # Tiny one-time weight prep only — no passes over the big activation arrays.
    w1s_t = w1[:c, :].T.astype(jnp.bfloat16)         # (H, C)
    w1d_t = w1[c:, :].T.astype(jnp.bfloat16)         # (H, C)
    b1_2d = b1.reshape(hidden, 1).astype(jnp.float32)
    w2_t = w2.T.astype(jnp.bfloat16)                 # (out_ch, H)
    b2_2d = b2.reshape(out_ch, 1).astype(jnp.float32)

    flops = 2 * n * (2 * c * hidden + hidden * out_ch)
    bytes_accessed = (
        n * 2 * c * 4                                # f32 activation rows in
        + 2 * c * hidden * 2 + out_ch * hidden * 2   # bf16 weights
        + (hidden + out_ch) * 4                      # biases
        + n * out_ch * 4                             # f32 output
    )

    # Per-step VMEM: 2 inputs x 2 buffers x lane-padded (tile_m, 128) f32 blocks, plus
    # bf16 copies / hT / output block; headroom for compiler temps. Safe on all gens
    # (v7x has only 64 MiB physical VMEM).
    vmem_limit = int(min(tile_m * 4096 + (16 << 20), 56 << 20))

    out = pl.pallas_call(
        _linkpred_kernel,
        out_shape=jax.ShapeDtypeStruct((out_ch, n), jnp.float32),
        grid_spec=pltpu.PrefetchScalarGridSpec(
            num_scalar_prefetch=0,
            grid=(grid_m,),
            in_specs=[
                pl.BlockSpec((tile_m, c), lambda i: (i, 0)),       # z_src rows (ragged last block OK)
                pl.BlockSpec((tile_m, c), lambda i: (i, 0)),       # z_dst rows
                pl.BlockSpec((hidden, c), lambda i: (0, 0)),       # W1[:C]^T  (constant block -> fetched once)
                pl.BlockSpec((hidden, c), lambda i: (0, 0)),       # W1[C:]^T
                pl.BlockSpec((hidden, 1), lambda i: (0, 0)),       # b1
                pl.BlockSpec((out_ch, hidden), lambda i: (0, 0)),  # W2^T
                pl.BlockSpec((out_ch, 1), lambda i: (0, 0)),       # b2
            ],
            out_specs=pl.BlockSpec((out_ch, tile_m), lambda i: (0, i)),
        ),
        compiler_params=pltpu.CompilerParams(
            dimension_semantics=("parallel",),
            vmem_limit_bytes=vmem_limit,
        ),
        cost_estimate=pl.CostEstimate(
            flops=flops, transcendentals=0, bytes_accessed=bytes_accessed,
        ),
    )(z_src, z_dst, w1s_t, w1d_t, b1_2d, w2_t, b2_2d)

    # (out_ch, n) -> row-major (n, out_ch) flatten == torch x.view(-1).
    # NOTE: for out_ch == 1 XLA folds the .T into a reshape (free); for multi-channel
    # heads prefer consuming the (out_ch, n) layout directly to avoid an HBM transpose.
    return out.T.reshape(-1)


def init_params(key, in_channels, hidden_channels, out_channels):
    """Deterministic init mimicking torch.nn.Linear (uniform +-1/sqrt(fan_in))."""
    k1, k2, k3, k4 = jax.random.split(key, 4)
    fan1 = 2 * in_channels
    fan2 = hidden_channels
    bound1 = 1.0 / jnp.sqrt(fan1)
    bound2 = 1.0 / jnp.sqrt(fan2)
    # Stored as (in_features, out_features), i.e. PyTorch weight transposed.
    w1 = jax.random.uniform(k1, (fan1, hidden_channels), jnp.float32, -bound1, bound1)
    b1 = jax.random.uniform(k2, (hidden_channels,), jnp.float32, -bound1, bound1)
    w2 = jax.random.uniform(k3, (hidden_channels, out_channels), jnp.float32, -bound2, bound2)
    b2 = jax.random.uniform(k4, (out_channels,), jnp.float32, -bound2, bound2)
    return {"w1": w1, "b1": b1, "w2": w2, "b2": b2}


def _reference(z_src, z_dst, params):
    x = jnp.concatenate([z_src, z_dst], axis=-1)
    x = jnp.maximum(x @ params["w1"] + params["b1"], 0.0)
    x = x @ params["w2"] + params["b2"]
    return x.reshape(-1)


if __name__ == "__main__":
    in_channels = 16
    hidden_channels = 32
    out_channels = 1

    key = jax.random.PRNGKey(0)
    k_src, k_dst, k_param, k_src2, k_dst2 = jax.random.split(key, 5)
    params = init_params(k_param, in_channels, hidden_channels, out_channels)

    # Case 1: tiny n — single ragged block (block bigger than the array), tile clamp path.
    num_edges = 8
    z_src = jax.random.normal(k_src, (num_edges, in_channels), jnp.float32)
    z_dst = jax.random.normal(k_dst, (num_edges, in_channels), jnp.float32)
    out = jax.block_until_ready(link_predictor_forward(z_src, z_dst, params))
    ref = _reference(z_src, z_dst, params)
    assert out.shape == (num_edges * out_channels,)
    # bf16 matmul operands => relaxed tolerance vs f32 reference.
    assert jnp.allclose(out, ref, atol=3e-2, rtol=3e-2), "mismatch vs JAX reference (small)"

    # Case 2: n=300, default tile_m -> clamped to 256 (>=2 grid steps), ragged last block.
    num_edges2 = 300
    z_src2 = jax.random.normal(k_src2, (num_edges2, in_channels), jnp.float32)
    z_dst2 = jax.random.normal(k_dst2, (num_edges2, in_channels), jnp.float32)
    out2 = jax.block_until_ready(link_predictor_forward(z_src2, z_dst2, params))
    ref2 = _reference(z_src2, z_dst2, params)
    assert out2.shape == (num_edges2 * out_channels,)
    assert jnp.allclose(out2, ref2, atol=3e-2, rtol=3e-2), "mismatch vs JAX reference (clamped tile)"

    # Case 3: n=300, explicit tile_m=128 -> 3 grid steps, ragged last block of 44 rows.
    out3 = jax.block_until_ready(link_predictor_forward(z_src2, z_dst2, params, tile_m=128))
    assert out3.shape == (num_edges2 * out_channels,)
    assert jnp.allclose(out3, ref2, atol=3e-2, rtol=3e-2), "mismatch vs JAX reference (tiled)"

    print("KERNEL_OK")
</pallas_src>

<mosaic_0001>
module attributes {stable_mosaic.version = 11 : i64} {
  func.func @_linkpred_kernel(%arg0: i32, %arg1: memref<128x16xf32, #tpu.memory_space<vmem>>, %arg2: memref<128x16xf32, #tpu.memory_space<vmem>>, %arg3: memref<32x16xbf16, #tpu.memory_space<vmem>>, %arg4: memref<32x16xbf16, #tpu.memory_space<vmem>>, %arg5: memref<32x1xf32, #tpu.memory_space<vmem>>, %arg6: memref<1x32xbf16, #tpu.memory_space<vmem>>, %arg7: memref<1x1xf32, #tpu.memory_space<vmem>>, %arg8: memref<1x128xf32, #tpu.memory_space<vmem>>) attributes {dimension_semantics = [#tpu.dimension_semantics<parallel>], iteration_bounds = array<i64: 1>, scalar_prefetch = 0 : i64, scratch_operands = 0 : i64, tpu.core_type = #tpu.core_type<tc>, window_params = [{transform_indices = @transform_0, window_bounds = array<i64: 128, 16>}, {transform_indices = @transform_1, window_bounds = array<i64: 128, 16>}, {pipeline_mode = #tpu.pipeline_mode<synchronous>, transform_indices = @transform_2, window_bounds = array<i64: 32, 16>}, {pipeline_mode = #tpu.pipeline_mode<synchronous>, transform_indices = @transform_3, window_bounds = array<i64: 32, 16>}, {pipeline_mode = #tpu.pipeline_mode<synchronous>, transform_indices = @transform_4, window_bounds = array<i64: 32, 1>}, {pipeline_mode = #tpu.pipeline_mode<synchronous>, transform_indices = @transform_5, window_bounds = array<i64: 1, 32>}, {pipeline_mode = #tpu.pipeline_mode<synchronous>, transform_indices = @transform_6, window_bounds = array<i64: 1, 1>}, {transform_indices = @transform_7, window_bounds = array<i64: 1, 128>}]} {
    %c0 = arith.constant 0 : index
    %c0_0 = arith.constant 0 : index
    %0 = vector.load %arg1[%c0, %c0_0] : memref<128x16xf32, #tpu.memory_space<vmem>>, vector<128x16xf32>
    %1 = arith.truncf %0 : vector<128x16xf32> to vector<128x16xbf16>
    %c0_1 = arith.constant 0 : index
    %c0_2 = arith.constant 0 : index
    %2 = vector.load %arg2[%c0_1, %c0_2] : memref<128x16xf32, #tpu.memory_space<vmem>>, vector<128x16xf32>
    %3 = arith.truncf %2 : vector<128x16xf32> to vector<128x16xbf16>
    %c0_3 = arith.constant 0 : index
    %c0_4 = arith.constant 0 : index
    %4 = vector.load %arg3[%c0_3, %c0_4] : memref<32x16xbf16, #tpu.memory_space<vmem>>, vector<32x16xbf16>
    %cst = arith.constant dense<0.000000e+00> : vector<32x128xf32>
    %5 = tpu.matmul %4, %1, %cst {dimension_numbers = #tpu.dot_dimension_numbers<[1], [1], [0], [0], [0, 0, 1, 0], [], []>} : vector<32x16xbf16>, vector<128x16xbf16>, vector<32x128xf32> -> vector<32x128xf32>
    %c0_5 = arith.constant 0 : index
    %c0_6 = arith.constant 0 : index
    %6 = vector.load %arg4[%c0_5, %c0_6] : memref<32x16xbf16, #tpu.memory_space<vmem>>, vector<32x16xbf16>
    %cst_7 = arith.constant dense<0.000000e+00> : vector<32x128xf32>
    %7 = tpu.matmul %6, %3, %cst_7 {dimension_numbers = #tpu.dot_dimension_numbers<[1], [1], [0], [0], [0, 0, 1, 0], [], []>} : vector<32x16xbf16>, vector<128x16xbf16>, vector<32x128xf32> -> vector<32x128xf32>
    %8 = arith.addf %5, %7 : vector<32x128xf32>
    %c0_8 = arith.constant 0 : index
    %c0_9 = arith.constant 0 : index
    %9 = vector.load %arg5[%c0_8, %c0_9] : memref<32x1xf32, #tpu.memory_space<vmem>>, vector<32x1xf32>
    %10 = vector.broadcast %9 : vector<32x1xf32> to vector<32x128xf32>
    %11 = arith.addf %8, %10 : vector<32x128xf32>
    %cst_10 = arith.constant 0.000000e+00 : f32
    %12 = vector.broadcast %cst_10 : f32 to vector<32x128xf32>
    %13 = arith.maximumf %11, %12 : vector<32x128xf32>
    %c0_11 = arith.constant 0 : index
    %c0_12 = arith.constant 0 : index
    %14 = vector.load %arg6[%c0_11, %c0_12] : memref<1x32xbf16, #tpu.memory_space<vmem>>, vector<1x32xbf16>
    %15 = arith.truncf %13 : vector<32x128xf32> to vector<32x128xbf16>
    %cst_13 = arith.constant dense<0.000000e+00> : vector<1x128xf32>
    %16 = tpu.matmul %14, %15, %cst_13 {dimension_numbers = #tpu.dot_dimension_numbers<[1], [0], [0], [1], [0, 0, 1, 1], [], []>} : vector<1x32xbf16>, vector<32x128xbf16>, vector<1x128xf32> -> vector<1x128xf32>
    %c0_14 = arith.constant 0 : index
    %c0_15 = arith.constant 0 : index
    %17 = vector.load %arg7[%c0_14, %c0_15] : memref<1x1xf32, #tpu.memory_space<vmem>>, vector<1x1xf32>
    %18 = vector.broadcast %17 : vector<1x1xf32> to vector<1x128xf32>
    %19 = arith.addf %16, %18 : vector<1x128xf32>
    %c0_16 = arith.constant 0 : index
    %c0_17 = arith.constant 0 : index
    %20 = vector.load %arg8[%c0_16, %c0_17] : memref<1x128xf32, #tpu.memory_space<vmem>>, vector<1x128xf32>
    tpu.vector_store %arg8[%c0_16, %c0_17], %19 {strides = array<i32>} : memref<1x128xf32, #tpu.memory_space<vmem>>, vector<1x128xf32>,
    return
  }
  func.func @transform_0(%arg0: i32) -> (i32, i32) {
    %c0_i32 = arith.constant 0 : i32
    %c0_i32_0 = arith.constant 0 : i32
    return %arg0, %c0_i32 : i32, i32
  }
  func.func @transform_1(%arg0: i32) -> (i32, i32) {
    %c0_i32 = arith.constant 0 : i32
    %c0_i32_0 = arith.constant 0 : i32
    return %arg0, %c0_i32 : i32, i32
  }
  func.func @transform_2(%arg0: i32) -> (i32, i32) {
    %c0_i32 = arith.constant 0 : i32
    %c0_i32_0 = arith.constant 0 : i32
    %c0_i32_1 = arith.constant 0 : i32
    return %c0_i32, %c0_i32_0 : i32, i32
  }
  func.func @transform_3(%arg0: i32) -> (i32, i32) {
    %c0_i32 = arith.constant 0 : i32
    %c0_i32_0 = arith.constant 0 : i32
    %c0_i32_1 = arith.constant 0 : i32
    return %c0_i32, %c0_i32_0 : i32, i32
  }
  func.func @transform_4(%arg0: i32) -> (i32, i32) {
    %c0_i32 = arith.constant 0 : i32
    %c0_i32_0 = arith.constant 0 : i32
    %c0_i32_1 = arith.constant 0 : i32
    return %c0_i32, %c0_i32_0 : i32, i32
  }
  func.func @transform_5(%arg0: i32) -> (i32, i32) {
    %c0_i32 = arith.constant 0 : i32
    %c0_i32_0 = arith.constant 0 : i32
    %c0_i32_1 = arith.constant 0 : i32
    return %c0_i32, %c0_i32_0 : i32, i32
  }
  func.func @transform_6(%arg0: i32) -> (i32, i32) {
    %c0_i32 = arith.constant 0 : i32
    %c0_i32_0 = arith.constant 0 : i32
    %c0_i32_1 = arith.constant 0 : i32
    return %c0_i32, %c0_i32_0 : i32, i32
  }
  func.func @transform_7(%arg0: i32) -> (i32, i32) {
    %c0_i32 = arith.constant 0 : i32
    %c0_i32_0 = arith.constant 0 : i32
    return %c0_i32, %arg0 : i32, i32
  }
}

</mosaic_0001>

<llo_original>
// kernel: tpu_custom_call.1
$region0: #{tpu_custom_call.1}
  #allocation0 [shape = 'u32[]', space=smem, size = 0x4, offset = 0x4, fixed_abs, tag = 'smem constant byte address 0x4 - core index']
  #allocation1 [shape = 'u32[144,128]{1,0:T(1,128)}', space=vmem, size = 0x12000, scoped, tag = 'internal scratch']
  #allocation2 [shape = 'f32[1,1]{1,0:T(1,128)S(1)}', space=vmem, size = 0x200, scoped, tag = 'scoped memory for tpu_custom_call.1']
  %s0 = inlined_call_operand.vmem [shape: f32[8,16], index: 0, kind: input, shape index: {}]
  %s1 = inlined_call_operand.vmem [shape: f32[8,16], index: 1, kind: input, shape index: {}]
  %s2 = inlined_call_operand.vmem [shape: bf16[32,16], index: 2, kind: input, shape index: {}]
  %s3 = inlined_call_operand.vmem [shape: bf16[32,16], index: 3, kind: input, shape index: {}]
  %s4 = inlined_call_operand.vmem [shape: f32[32,1], index: 4, kind: input, shape index: {}]
  %s5 = inlined_call_operand.vmem [shape: bf16[1,32], index: 5, kind: input, shape index: {}]
  %s6 = inlined_call_operand.<no memory space> [shape: f32[1,1], index: 6, kind: input, shape index: {}]
  %s7 = inlined_call_operand.hbm [shape: f32[1,8], index: 7, kind: output, shape index: {}]
  %s8 = sld [smem:[#allocation0]]
  $region38: #{tpu_custom_call.1} parent=0
    _
  %s10 = ssub.s32 1, %s8
  %s11 = scalar_select 0, %s10, %s8
  %v12 = vstv %s6
  %13 = vst [vmem:[#allocation2] sm:$0x1] %v12
  $region1: #{tpu_custom_call.1} parent=0
    #allocation3 [shape = 'u8[512]{0}', space=vmem, size = 0x400, scoped, tag = 'output window, operand 0, single buffered']
    #allocation4 [shape = 's32[1]{0}', space=sflag, size = 0x4, scoped, tag = 'scoped memory for tpu_custom_call.1']
    %14 = vsyncpa [#allocation4], 0
    // Predicated region
    $region2: #{tpu_custom_call.1} parent=1 // pred_check
      _
    $region3: #{tpu_custom_call.1} parent=1 // pred_check_branch
      %16 = sbr.rel (0) target = $region5
    $region4: #{tpu_custom_call.1} parent=1 // pred_region
      _
    $region5: #{tpu_custom_call.1} parent=1 // pred_fallthru
      _
    // Predicated region
    $region6: #{tpu_custom_call.1} parent=1 // pred_check
      _
    $region7: #{tpu_custom_call.1} parent=1 // pred_check_branch
      %18 = sbr.rel (0) target = $region9
    $region8: #{tpu_custom_call.1} parent=1 // pred_region
      _
    $region9: #{tpu_custom_call.1} parent=1 // pred_fallthru
      _
    // Predicated region
    $region10: #{tpu_custom_call.1} parent=1 // pred_check
      _
    $region11: #{tpu_custom_call.1} parent=1 // pred_check_branch
      %20 = sbr.rel (0) target = $region13
    $region12: #{tpu_custom_call.1} parent=1 // pred_region
      _
    $region13: #{tpu_custom_call.1} parent=1 // pred_fallthru
      _
    // Predicated region
    $region14: #{tpu_custom_call.1} parent=1 // pred_check
      _
    $region15: #{tpu_custom_call.1} parent=1 // pred_check_branch
      %22 = sbr.rel (0) target = $region17
    $region16: #{tpu_custom_call.1} parent=1 // pred_region
      _
    $region17: #{tpu_custom_call.1} parent=1 // pred_fallthru
      _
    // Predicated region
    $region18: #{tpu_custom_call.1} parent=1 // pred_check
      _
    $region19: #{tpu_custom_call.1} parent=1 // pred_check_branch
      %24 = sbr.rel (0) target = $region21
    $region20: #{tpu_custom_call.1} parent=1 // pred_region
      _
    $region21: #{tpu_custom_call.1} parent=1 // pred_fallthru
      _
    // Predicated region
    $region22: #{tpu_custom_call.1} parent=1 // pred_check
      _
    $region23: #{tpu_custom_call.1} parent=1 // pred_check_branch
      %26 = sbr.rel (0) target = $region25
    $region24: #{tpu_custom_call.1} parent=1 // pred_region
      _
    $region25: #{tpu_custom_call.1} parent=1 // pred_fallthru
      _
    // Predicated region
    $region26: #{tpu_custom_call.1} parent=1 // pred_check
      _
    $region27: #{tpu_custom_call.1} parent=1 // pred_check_branch
      %28 = sbr.rel (0) target = $region29
    $region28: #{tpu_custom_call.1} parent=1 // pred_region
      _
    $region29: #{tpu_custom_call.1} parent=1 // pred_fallthru
      _
    %v30 = vld [vmem:[%s0] sm:$0xff]
    %v31 = vld [vmem:[%s0 + $0x8] sm:$0xff]
    %v32 = vld [vmem:[%s0 + $0x10] sm:$0xff]
    %v33 = vld [vmem:[%s0 + $0x18] sm:$0xff]
    %v34 = vld [vmem:[%s0 + $0x20] sm:$0xff]
    %v35 = vld [vmem:[%s0 + $0x28] sm:$0xff]
    %v36 = vld [vmem:[%s0 + $0x30] sm:$0xff]
    %v37 = vld [vmem:[%s0 + $0x38] sm:$0xff]
    %v38 = vld [vmem:[%s0 + $0x40] sm:$0xff]
    %v39 = vld [vmem:[%s0 + $0x48] sm:$0xff]
    %v40 = vld [vmem:[%s0 + $0x50] sm:$0xff]
    %v41 = vld [vmem:[%s0 + $0x58] sm:$0xff]
    %v42 = vld [vmem:[%s0 + $0x60] sm:$0xff]
    %v43 = vld [vmem:[%s0 + $0x68] sm:$0xff]
    %v44 = vld [vmem:[%s0 + $0x70] sm:$0xff]
    %v45 = vld [vmem:[%s0 + $0x78] sm:$0xff]
    %v46 = vpack.c.bf16 %v31, %v30
    %v47 = vpack.c.bf16 %v33, %v32
    %v48 = vpack.c.bf16 %v35, %v34
    %v49 = vpack.c.bf16 %v37, %v36
    %v50 = vpack.c.bf16 %v39, %v38
    %v51 = vpack.c.bf16 %v41, %v40
    %v52 = vpack.c.bf16 %v43, %v42
    %v53 = vpack.c.bf16 %v45, %v44
    %v54 = vld [vmem:[%s1] sm:$0xff]
    %v55 = vld [vmem:[%s1 + $0x8] sm:$0xff]
    %v56 = vld [vmem:[%s1 + $0x10] sm:$0xff]
    %v57 = vld [vmem:[%s1 + $0x18] sm:$0xff]
    %v58 = vld [vmem:[%s1 + $0x20] sm:$0xff]
    %v59 = vld [vmem:[%s1 + $0x28] sm:$0xff]
    %v60 = vld [vmem:[%s1 + $0x30] sm:$0xff]
    %v61 = vld [vmem:[%s1 + $0x38] sm:$0xff]
    %v62 = vld [vmem:[%s1 + $0x40] sm:$0xff]
    %v63 = vld [vmem:[%s1 + $0x48] sm:$0xff]
    %v64 = vld [vmem:[%s1 + $0x50] sm:$0xff]
    %v65 = vld [vmem:[%s1 + $0x58] sm:$0xff]
    %v66 = vld [vmem:[%s1 + $0x60] sm:$0xff]
    %v67 = vld [vmem:[%s1 + $0x68] sm:$0xff]
    %v68 = vld [vmem:[%s1 + $0x70] sm:$0xff]
    %v69 = vld [vmem:[%s1 + $0x78] sm:$0xff]
    %v70 = vpack.c.bf16 %v55, %v54
    %v71 = vpack.c.bf16 %v57, %v56
    %v72 = vpack.c.bf16 %v59, %v58
    %v73 = vpack.c.bf16 %v61, %v60
    %v74 = vpack.c.bf16 %v63, %v62
    %v75 = vpack.c.bf16 %v65, %v64
    %v76 = vpack.c.bf16 %v67, %v66
    %v77 = vpack.c.bf16 %v69, %v68
    %v78 = vld [vmem:[%s2] sm:$0xf]
    %v79 = vld [vmem:[%s2 + $0x4] sm:$0xf]
    %v80 = vld [vmem:[%s2 + $0x8] sm:$0xf]
    %v81 = vld [vmem:[%s2 + $0xc] sm:$0xf]
    %v82 = vld [vmem:[%s3] sm:$0xf]
    %v83 = vld [vmem:[%s3 + $0x4] sm:$0xf]
    %v84 = vld [vmem:[%s3 + $0x8] sm:$0xf]
    %v85 = vld [vmem:[%s3 + $0xc] sm:$0xf]
    %v90 = vunpack.c.l.b16 %v82
    %v91 = vunpack.c.l.b16 %v83
    %v92 = vunpack.c.l.b16 %v84
    %v93 = vunpack.c.l.b16 %v85
    %v94 = vpack.c.b16 %v91, %v90
    %v95 = vpack.c.b16 %v93, %v92
    %vm96 = vcmask 130048
    %v98 = vsel %vm96, %v94, 0
    %v101 = vsel %vm96, %v95, 0
    %v104 = vsel %vm96, %v70, 0
    %v107 = vsel %vm96, %v71, 0
    %v110 = vsel %vm96, %v72, 0
    %v113 = vsel %vm96, %v73, 0
    %v116 = vsel %vm96, %v74, 0
    %v119 = vsel %vm96, %v75, 0
    %v122 = vsel %vm96, %v76, 0
    %v125 = vsel %vm96, %v77, 0
    %127 = vmatprep.subr.bf16.mxu0 0
    %128 = vmatpush1.bf16.xpose.msra.mxu0 %v125
    %129 = vmatprep.subr.bf16.mxu0 0
    %130 = vmatpush1.bf16.xpose.msra.mxu0 %v122
    %131 = vmatprep.subr.bf16.mxu0 0
    %132 = vmatpush1.bf16.xpose.msra.mxu0 %v119
    %133 = vmatprep.subr.bf16.mxu0 0
    %134 = vmatpush1.bf16.xpose.msra.mxu0 %v116
    %135 = vmatprep.subr.bf16.mxu0 0
    %136 = vmatpush1.bf16.xpose.msra.mxu0 %v113
    %137 = vmatprep.subr.bf16.mxu0 0
    %138 = vmatpush1.bf16.xpose.msra.mxu0 %v110
    %139 = vmatprep.subr.bf16.mxu0 0
    %140 = vmatpush1.bf16.xpose.msra.mxu0 %v107
    %141 = vmatprep.subr.bf16.mxu0 0
    %142 = vmatpush1.bf16.xpose.msra.mxu0 %v104
    %143 = vmatprep.subr.bf16.mxu0 0
    %144 = vmatpush2.bf16.xpose.msra.mxu0 0
    %145 = vmatprep.subr.bf16.mxu0 0
    %146 = vmatpush2.bf16.xpose.msra.mxu0 0
    %147 = vmatprep.subr.bf16.mxu0 0
    %148 = vmatpush2.bf16.xpose.msra.mxu0 0
    %149 = vmatprep.subr.bf16.mxu0 0
    %150 = vmatpush2.bf16.xpose.msra.mxu0 0
    %151 = vmatprep.subr.bf16.mxu0 0
    %152 = vmatpush2.bf16.xpose.msra.mxu0 0
    %153 = vmatprep.subr.bf16.mxu0 0
    %154 = vmatpush2.bf16.xpose.msra.mxu0 0
    %155 = vmatprep.subr.bf16.mxu0 0
    %156 = vmatpush2.bf16.xpose.msra.mxu0 0
    %157 = vmatprep.subr.bf16.mxu0 0
    %158 = vmatpush2.bf16.xpose.msra.mxu0 0
    %159 = vmatprep.mubr.bf16.mxu0 0
    %160 = vmatmul.mubr.bf16.gmra.mxu0 %v98
    %v161 = vpop.f32.mrf.mxu0
    %v162 = vadd.f32 0.0, %v161
    %v163 = vpop.f32.mrf.mxu0
    %v164 = vpop.f32.mrf.mxu0
    %v165 = vadd.f32 0.0, %v164
    %v166 = vpop.f32.mrf.mxu0
    %167 = vmatprep.mubr.bf16.mxu0 0
    %168 = vmatmul.mubr.bf16.gmra.mxu0 %v101
    %v169 = vpop.f32.mrf.mxu0
    %v170 = vadd.f32 0.0, %v169
    %v171 = vpop.f32.mrf.mxu0
    %v172 = vpop.f32.mrf.mxu0
    %v173 = vadd.f32 0.0, %v172
    %v174 = vpop.f32.mrf.mxu0
    %175 = vdwg.mxu0
    %v180 = vunpack.c.l.b16 %v78
    %v181 = vunpack.c.l.b16 %v79
    %v182 = vunpack.c.l.b16 %v80
    %v183 = vunpack.c.l.b16 %v81
    %v184 = vpack.c.b16 %v181, %v180
    %v185 = vpack.c.b16 %v183, %v182
    %v187 = vsel %vm96, %v184, 0
    %v190 = vsel %vm96, %v185, 0
    %v193 = vsel %vm96, %v46, 0
    %v196 = vsel %vm96, %v47, 0
    %v199 = vsel %vm96, %v48, 0
    %v202 = vsel %vm96, %v49, 0
    %v205 = vsel %vm96, %v50, 0
    %v208 = vsel %vm96, %v51, 0
    %v211 = vsel %vm96, %v52, 0
    %v214 = vsel %vm96, %v53, 0
    %216 = vmatprep.subr.bf16.mxu0 0
    %217 = vmatpush1.bf16.xpose.msra.mxu0 %v214
    %218 = vmatprep.subr.bf16.mxu0 0
    %219 = vmatpush1.bf16.xpose.msra.mxu0 %v211
    %220 = vmatprep.subr.bf16.mxu0 0
    %221 = vmatpush1.bf16.xpose.msra.mxu0 %v208
    %222 = vmatprep.subr.bf16.mxu0 0
    %223 = vmatpush1.bf16.xpose.msra.mxu0 %v205
    %224 = vmatprep.subr.bf16.mxu0 0
    %225 = vmatpush1.bf16.xpose.msra.mxu0 %v202
    %226 = vmatprep.subr.bf16.mxu0 0
    %227 = vmatpush1.bf16.xpose.msra.mxu0 %v199
    %228 = vmatprep.subr.bf16.mxu0 0
    %229 = vmatpush1.bf16.xpose.msra.mxu0 %v196
    %230 = vmatprep.subr.bf16.mxu0 0
    %231 = vmatpush1.bf16.xpose.msra.mxu0 %v193
    %232 = vmatprep.subr.bf16.mxu0 0
    %233 = vmatpush2.bf16.xpose.msra.mxu0 0
    %234 = vmatprep.subr.bf16.mxu0 0
    %235 = vmatpush2.bf16.xpose.msra.mxu0 0
    %236 = vmatprep.subr.bf16.mxu0 0
    %237 = vmatpush2.bf16.xpose.msra.mxu0 0
    %238 = vmatprep.subr.bf16.mxu0 0
    %239 = vmatpush2.bf16.xpose.msra.mxu0 0
    %240 = vmatprep.subr.bf16.mxu0 0
    %241 = vmatpush2.bf16.xpose.msra.mxu0 0
    %242 = vmatprep.subr.bf16.mxu0 0
    %243 = vmatpush2.bf16.xpose.msra.mxu0 0
    %244 = vmatprep.subr.bf16.mxu0 0
    %245 = vmatpush2.bf16.xpose.msra.mxu0 0
    %246 = vmatprep.subr.bf16.mxu0 0
    %247 = vmatpush2.bf16.xpose.msra.mxu0 0
    %248 = vmatprep.mubr.bf16.mxu0 0
    %249 = vmatmul.mubr.bf16.gmra.mxu0 %v187
    %v250 = vpop.f32.mrf.mxu0
    %v251 = vadd.f32 %v162, %v250
    %v252 = vpop.f32.mrf.mxu0
    %v253 = vpop.f32.mrf.mxu0
    %v254 = vadd.f32 %v165, %v253
    %v255 = vpop.f32.mrf.mxu0
    %256 = vmatprep.mubr.bf16.mxu0 0
    %257 = vmatmul.mubr.bf16.gmra.mxu0 %v190
    %v258 = vpop.f32.mrf.mxu0
    %v259 = vadd.f32 %v170, %v258
    %v260 = vpop.f32.mrf.mxu0
    %v261 = vpop.f32.mrf.mxu0
    %v262 = vadd.f32 %v173, %v261
    %v263 = vpop.f32.mrf.mxu0
    %264 = vdwg.mxu0
    %v265 = vld [vmem:[%s4] sm:$0xff]
    %v266 = vld [vmem:[%s4 + $0x8] sm:$0xff]
    %v267 = vld [vmem:[%s4 + $0x10] sm:$0xff]
    %v268 = vld [vmem:[%s4 + $0x18] sm:$0xff]
    %270 = vset.pattern.permute.xlu0 0
    %271 = vperm.xlu0 %270, %v265
    %v272 = vpop.permute.xlu0 %271
    %275 = vset.pattern.permute.xlu0 0
    %276 = vperm.xlu0 %275, %v266
    %v277 = vpop.permute.xlu0 %276
    %280 = vset.pattern.permute.xlu0 0
    %281 = vperm.xlu0 %280, %v267
    %v282 = vpop.permute.xlu0 %281
    %285 = vset.pattern.permute.xlu0 0
    %286 = vperm.xlu0 %285, %v268
    %v287 = vpop.permute.xlu0 %286
    %v289 = vadd.f32 %v251, %v272
    %v290 = vadd.f32 %v254, %v277
    %v291 = vadd.f32 %v259, %v282
    %v292 = vadd.f32 %v262, %v287
    %v293 = vmax.f32 %v289, 0.0
    %v294 = vmax.f32 %v290, 0.0
    %v295 = vmax.f32 %v291, 0.0
    %v296 = vmax.f32 %v292, 0.0
    %v297 = vld [vmem:[%s5] sm:$0x1]
    %v298 = vpack.c.bf16 %v294, %v293
    %v299 = vpack.c.bf16 %v296, %v295
    %v300 = vld [vmem:[#allocation2] sm:$0x1]
    %302 = vset.pattern.permute.xlu0 0
    %303 = vperm.xlu0 %302, %v300
    %v304 = vpop.permute.xlu0 %303
    %v306 = vlaneseq
    %v307 = vshrl.u32 %v306, 7
    %v308 = vsub.s32 0, %v307
    %v309 = vrot.slane %v304, %v308
    %vm310 = vcmask 261120
    %v312 = vsel %vm310, %v297, 0
    %314 = vmatprep.subr.bf16.mxu0 0
    %315 = vmatpush1.bf16.msra.mxu0 0
    %316 = vmatprep.subr.bf16.mxu0 0
    %317 = vmatpush1.bf16.msra.mxu0 0
    %318 = vmatprep.subr.bf16.mxu0 0
    %319 = vmatpush1.bf16.msra.mxu0 0
    %320 = vmatprep.subr.bf16.mxu0 0
    %321 = vmatpush1.bf16.msra.mxu0 0
    %322 = vmatprep.subr.bf16.mxu0 0
    %323 = vmatpush1.bf16.msra.mxu0 0
    %324 = vmatprep.subr.bf16.mxu0 0
    %325 = vmatpush1.bf16.msra.mxu0 0
    %326 = vmatprep.subr.bf16.mxu0 0
    %327 = vmatpush1.bf16.msra.mxu0 %v299
    %328 = vmatprep.subr.bf16.mxu0 0
    %329 = vmatpush1.bf16.msra.mxu0 %v298
    %330 = vmatprep.subr.bf16.mxu0 0
    %331 = vmatpush2.bf16.msra.mxu0 0
    %332 = vmatprep.subr.bf16.mxu0 0
    %333 = vmatpush2.bf16.msra.mxu0 0
    %334 = vmatprep.subr.bf16.mxu0 0
    %335 = vmatpush2.bf16.msra.mxu0 0
    %336 = vmatprep.subr.bf16.mxu0 0
    %337 = vmatpush2.bf16.msra.mxu0 0
    %338 = vmatprep.subr.bf16.mxu0 0
    %339 = vmatpush2.bf16.msra.mxu0 0
    %340 = vmatprep.subr.bf16.mxu0 0
    %341 = vmatpush2.bf16.msra.mxu0 0
    %342 = vmatprep.subr.bf16.mxu0 0
    %343 = vmatpush2.bf16.msra.mxu0 0
    %344 = vmatprep.subr.bf16.mxu0 0
    %345 = vmatpush2.bf16.msra.mxu0 0
    %346 = vmatprep.mubr.bf16.mxu0 0
    %347 = vmatmul.mubr.bf16.gmra.mxu0 %v312
    %v348 = vpop.f32.mrf.mxu0
    %v349 = vadd.f32 %v309, %v348
    %v350 = vpop.f32.mrf.mxu0
    %v351 = vpop.f32.mrf.mxu0
    %v352 = vpop.f32.mrf.mxu0
    %353 = vdwg.mxu0
    %354 = vst [vmem:[#allocation3] sm:$0x1] %v349
    // Predicated region
    $region30: #{tpu_custom_call.1} parent=1 // pred_check
      _
    $region31: #{tpu_custom_call.1} parent=1 // pred_check_branch
      %356 = sbr.rel (0) target = $region33
    $region32: #{tpu_custom_call.1} parent=1 // pred_region
      %s358 = ssub.s32 16, 16
      %359 = vsyncadd [#allocation4], %s358
      %s361 = sshll.u32 [#allocation3], 4
      %s362 = int_to_ptr.vmem [resolvable:$true] %s361
      %364 = dma.vmem_to_hbm [thread:$0]  %s362, 16, %s7, [#allocation4]
    $region33: #{tpu_custom_call.1} parent=1 // pred_fallthru
      _
    // Predicated region
    $region34: #{tpu_custom_call.1} parent=1 // pred_check
      _
    $region35: #{tpu_custom_call.1} parent=1 // pred_check_branch
      %366 = sbr.rel (0) target = $region37
    $region36: #{tpu_custom_call.1} parent=1 // pred_region
      %367 = dma.done [#allocation4], 16
    $region37: #{tpu_custom_call.1} parent=1 // pred_fallthru
      _
    %368 = vsyncpa [#allocation4], 1

</llo_original>
